<compile_context>
chip_gen: v7x
topology: tpu7x:2x2x1
jax: 0.10.0
libtpu: 0.0.40
codegen_flags: <defaults>
</compile_context>

<pallas_src>
import functools

import jax
import jax.numpy as jnp
from jax.experimental import pallas as pl
from jax.experimental.pallas import tpu as pltpu


def _round_up(x, m):
    return ((x + m - 1) // m) * m


_VMEM_BUDGET = 40 * 1024 * 1024   # conservative: leaves headroom on v7x (64 MiB)


# ----------------------------- Pallas kernels ------------------------------ #

def _conv_down_kernel(x_ref, w_ref, b_ref, o_ref):
    # x_ref: (1, tP, Kp)  bf16 im2col activations (K = 9*Cin folded into contraction)
    # w_ref: (Kp, Coutp)  bf16 weights, VMEM-resident across the whole grid
    # b_ref: (1, Coutp)   f32 bias row
    # o_ref: (1, tP, Coutp)
    acc = jnp.dot(x_ref[0], w_ref[...], preferred_element_type=jnp.float32)
    o_ref[0] = (acc + b_ref[...]).astype(o_ref.dtype)


def _avgpool_down_kernel(x_ref, o_ref):
    # x_ref: (1, 2*tHo, Wo, 2*C)  -- the two W-phases folded into the lane dim
    # o_ref: (1, tHo, Wo, C)
    t_ho, wo, c = o_ref.shape[1], o_ref.shape[2], o_ref.shape[3]
    x = x_ref[0].reshape(t_ho, 2, wo, 2 * c)     # split leading dim: layout-free
    rows = x[:, 0] + x[:, 1]                     # sum over the H phase
    s = rows[:, :, :c] + rows[:, :, c:]          # sum over the W phase (lane halves)
    o_ref[0] = (s * 0.25).astype(o_ref.dtype)


# ------------------------------ JAX wrappers ------------------------------- #

def _pick_tp(p, kp, coutp, in_bytes, out_bytes, w_bytes):
    """Largest spatial tile (multiple of 8) whose double-buffered tiles fit VMEM."""
    cap = _round_up(p, 8)
    for cand in (1024, 512, 256, 128, 64, 32, 16, 8):
        tp = min(cand, cap)
        need = 2 * tp * kp * in_bytes + 2 * tp * coutp * out_bytes + w_bytes
        if need <= _VMEM_BUDGET:
            return tp, need
    tp = 8
    return tp, 2 * tp * kp * in_bytes + 2 * tp * coutp * out_bytes + w_bytes


@functools.partial(jax.jit, static_argnames=("compute_dtype",))
def _conv_downsample(x_nchw, weight_oihw, bias, *, compute_dtype=jnp.bfloat16):
    """3x3 / stride-2 / pad-1 conv via Pallas. x: (N, Cin, H, W)."""
    n, cin, h, w = x_nchw.shape
    cout = weight_oihw.shape[0]
    assert h % 2 == 0 and w % 2 == 0, "even spatial dims assumed"
    ho, wo = h // 2, w // 2
    p = ho * wo
    k = 9 * cin
    out_dtype = x_nchw.dtype

    # --- glue (XLA, fused under jit): pad, NHWC, gather the 9 stride-2 taps
    #     directly along the contraction dim (im2col, bf16 -> halves slab traffic).
    xc = x_nchw.astype(compute_dtype)
    xp = jnp.pad(xc, ((0, 0), (0, 0), (1, 1), (1, 1)))
    x_nhwc = jnp.transpose(xp, (0, 2, 3, 1))                  # (N, H+2, W+2, Cin)
    taps = []
    for ky in range(3):
        for kx in range(3):
            t = x_nhwc[:, ky:ky + 2 * ho:2, kx:kx + 2 * wo:2, :]   # (N, Ho, Wo, Cin)
            taps.append(t.reshape(n, p, cin))
    x_taps = jnp.concatenate(taps, axis=-1)                   # (N, P, 9*Cin)

    # Weight: (Cout, Cin, 3, 3) -> (ky, kx, Cin, Cout) -> (9*Cin, Cout); must
    # match the tap concatenation order above.
    w_mat = jnp.transpose(weight_oihw, (2, 3, 1, 0)).reshape(k, cout)
    w_mat = w_mat.astype(compute_dtype)

    # --- lane alignment: pad K and Cout to multiples of 128 (exact: zero-pad /
    #     slice) so vector loads & stores are unmasked, full-lane vregs.
    kp = _round_up(k, 128)
    coutp = _round_up(cout, 128)
    if kp != k:
        x_taps = jnp.pad(x_taps, ((0, 0), (0, 0), (0, kp - k)))
        w_mat = jnp.pad(w_mat, ((0, kp - k), (0, 0)))
    if coutp != cout:
        w_mat = jnp.pad(w_mat, ((0, 0), (0, coutp - cout)))
    b_row = jnp.pad(bias.astype(jnp.float32).reshape(1, cout),
                    ((0, 0), (0, coutp - cout)))

    # --- spatial tiling under an explicit VMEM budget (keeps double-buffering
    #     alive on v7x's 64 MiB while still using big tiles on v5e/v6e).
    in_bytes = jnp.dtype(compute_dtype).itemsize
    out_bytes = jnp.dtype(out_dtype).itemsize
    w_bytes = kp * coutp * in_bytes + coutp * 4
    tp, vmem_need = _pick_tp(p, kp, coutp, in_bytes, out_bytes, w_bytes)
    p_pad = _round_up(p, tp)
    if p_pad != p:
        x_taps = jnp.pad(x_taps, ((0, 0), (0, p_pad - p), (0, 0)))

    vmem_limit = min(max(vmem_need + (4 << 20), 32 << 20), 64 << 20)

    out_flat = pl.pallas_call(
        _conv_down_kernel,
        out_shape=jax.ShapeDtypeStruct((n, p_pad, coutp), out_dtype),
        grid=(n, p_pad // tp),
        in_specs=[
            pl.BlockSpec((1, tp, kp), lambda i, j: (i, j, 0)),
            pl.BlockSpec((kp, coutp), lambda i, j: (0, 0)),   # weights VMEM-resident
            pl.BlockSpec((1, coutp), lambda i, j: (0, 0)),
        ],
        out_specs=pl.BlockSpec((1, tp, coutp), lambda i, j: (i, j, 0)),
        compiler_params=pltpu.CompilerParams(
            dimension_semantics=("parallel", "parallel"),
            vmem_limit_bytes=vmem_limit),
    )(x_taps, w_mat, b_row)

    out_nhwc = out_flat[:, :p, :cout].reshape(n, ho, wo, cout)
    return jnp.transpose(out_nhwc, (0, 3, 1, 2))              # back to NCHW


@jax.jit
def _avgpool_downsample(x_nchw):
    """2x2 / stride-2 average pool via Pallas. x: (N, C, H, W)."""
    n, c, h, w = x_nchw.shape
    assert h % 2 == 0 and w % 2 == 0, "even spatial dims assumed"
    ho, wo = h // 2, w // 2
    itemsize = jnp.dtype(x_nchw.dtype).itemsize

    # One NHWC transpose, then a FREE row-major reshape folding the W-phase
    # pairs into the lane dim -- no separate phase-gather pass through HBM.
    x_nhwc = jnp.transpose(x_nchw, (0, 2, 3, 1))              # (N, H, W, C)
    x_fold = x_nhwc.reshape(n, h, wo, 2 * c)                  # bitcast reshape

    # Tile over output rows so blocks stay bounded at any resolution.
    row_bytes = 2 * wo * 2 * c * itemsize                     # input bytes / output row
    t_ho = max(1, min(ho, (4 << 20) // max(row_bytes, 1)))
    while ho % t_ho:
        t_ho -= 1

    in_need = 2 * (2 * t_ho) * wo * (2 * c) * itemsize
    out_need = 2 * t_ho * wo * c * itemsize
    vmem_limit = min(max(in_need + out_need + (4 << 20), 32 << 20), 64 << 20)

    out_nhwc = pl.pallas_call(
        _avgpool_down_kernel,
        out_shape=jax.ShapeDtypeStruct((n, ho, wo, c), x_nchw.dtype),
        grid=(n, ho // t_ho),
        in_specs=[pl.BlockSpec((1, 2 * t_ho, wo, 2 * c), lambda i, j: (i, j, 0, 0))],
        out_specs=pl.BlockSpec((1, t_ho, wo, c), lambda i, j: (i, j, 0, 0)),
        compiler_params=pltpu.CompilerParams(
            dimension_semantics=("parallel", "parallel"),
            vmem_limit_bytes=vmem_limit),
    )(x_fold)

    return jnp.transpose(out_nhwc, (0, 3, 1, 2))


class DownsamplePallas:
    """JAX/Pallas port of Downsample (dims=2 only)."""

    def __init__(self, channels, use_conv, dims=2, out_channels=None, padding=1,
                 key=None, compute_dtype=jnp.bfloat16):
        assert dims == 2, "only dims=2 implemented"  # TODO(synk): dims=1 / dims=3 variants
        assert padding == 1
        self.channels = channels
        self.out_channels = out_channels or channels
        self.use_conv = use_conv
        self.compute_dtype = compute_dtype
        if use_conv:
            key = key if key is not None else jax.random.PRNGKey(0)
            kw, kb = jax.random.split(key)
            fan_in = channels * 9
            bound = 1.0 / (fan_in ** 0.5)
            # deterministic init (PyTorch-default-style uniform)
            self.weight = jax.random.uniform(
                kw, (self.out_channels, channels, 3, 3), jnp.float32, -bound, bound)
            self.bias = jax.random.uniform(
                kb, (self.out_channels,), jnp.float32, -bound, bound)
        else:
            assert self.channels == self.out_channels

    def __call__(self, x):
        assert x.shape[1] == self.channels
        if self.use_conv:
            return _conv_downsample(x, self.weight, self.bias,
                                    compute_dtype=self.compute_dtype)
        return _avgpool_downsample(x)


# ------------------------------- references -------------------------------- #

def _conv_ref(x, w, b, compute_dtype=jnp.float32):
    out = jax.lax.conv_general_dilated(
        x.astype(compute_dtype), w.astype(compute_dtype),
        window_strides=(2, 2), padding=((1, 1), (1, 1)),
        dimension_numbers=("NCHW", "OIHW", "NCHW"),
        preferred_element_type=jnp.float32)
    return out.astype(x.dtype) + b.reshape(1, -1, 1, 1)


def _avgpool_ref(x):
    n, c, h, w = x.shape
    return x.reshape(n, c, h // 2, 2, w // 2, 2).mean(axis=(3, 5))


if __name__ == "__main__":
    key = jax.random.PRNGKey(0)
    kx, kparams = jax.random.split(key)
    x = jax.random.normal(kx, (2, 4, 16, 16), jnp.float32)  # NCHW

    # use_conv=True path (Conv2d 3x3, stride 2, pad 1)
    down_conv = DownsamplePallas(channels=4, use_conv=True, key=kparams)
    y_conv = jax.block_until_ready(down_conv(x))
    assert y_conv.shape == (2, 4, 8, 8)
    # Tight check against a reference that uses the same bf16-input / f32-acc math.
    y_ref_bf16 = _conv_ref(x, down_conv.weight, down_conv.bias, jnp.bfloat16)
    assert jnp.allclose(y_conv, y_ref_bf16, rtol=2e-2, atol=2e-2)
    # Sanity check against the pure-f32 reference (only bf16 input rounding differs).
    y_ref_f32 = _conv_ref(x, down_conv.weight, down_conv.bias, jnp.float32)
    assert jnp.allclose(y_conv, y_ref_f32, rtol=1e-1, atol=1e-1)

    # use_conv=False path (AvgPool2d 2x2, stride 2)
    down_pool = DownsamplePallas(channels=4, use_conv=False)
    y_pool = jax.block_until_ready(down_pool(x))
    assert y_pool.shape == (2, 4, 8, 8)
    assert jnp.allclose(y_pool, _avgpool_ref(x), rtol=1e-5, atol=1e-5)

    print("KERNEL_OK")
</pallas_src>

<mosaic_0001>
module attributes {stable_mosaic.version = 11 : i64} {
  func.func @_conv_down_kernel(%arg0: i32, %arg1: i32, %arg2: memref<1x64x128xbf16, #tpu.memory_space<vmem>>, %arg3: memref<128x128xbf16, #tpu.memory_space<vmem>>, %arg4: memref<1x128xf32, #tpu.memory_space<vmem>>, %arg5: memref<1x64x128xf32, #tpu.memory_space<vmem>>) attributes {dimension_semantics = [#tpu.dimension_semantics<parallel>, #tpu.dimension_semantics<parallel>], iteration_bounds = array<i64: 2, 1>, scalar_prefetch = 0 : i64, scratch_operands = 0 : i64, tpu.core_type = #tpu.core_type<tc>, window_params = [{transform_indices = @transform_0, window_bounds = array<i64: 1, 64, 128>}, {pipeline_mode = #tpu.pipeline_mode<synchronous>, transform_indices = @transform_1, window_bounds = array<i64: 128, 128>}, {pipeline_mode = #tpu.pipeline_mode<synchronous>, transform_indices = @transform_2, window_bounds = array<i64: 1, 128>}, {transform_indices = @transform_3, window_bounds = array<i64: 1, 64, 128>}]} {
    %c0 = arith.constant 0 : index
    %c0_0 = arith.constant 0 : index
    %c0_1 = arith.constant 0 : index
    %0 = vector.load %arg2[%c0, %c0_0, %c0_1] : memref<1x64x128xbf16, #tpu.memory_space<vmem>>, vector<1x64x128xbf16>
    %1 = vector.shape_cast %0 : vector<1x64x128xbf16> to vector<64x128xbf16>
    %c0_2 = arith.constant 0 : index
    %c0_3 = arith.constant 0 : index
    %2 = vector.load %arg3[%c0_2, %c0_3] : memref<128x128xbf16, #tpu.memory_space<vmem>>, vector<128x128xbf16>
    %cst = arith.constant dense<0.000000e+00> : vector<64x128xf32>
    %3 = tpu.matmul %1, %2, %cst {dimension_numbers = #tpu.dot_dimension_numbers<[1], [0], [0], [1], [0, 0, 1, 1], [], []>} : vector<64x128xbf16>, vector<128x128xbf16>, vector<64x128xf32> -> vector<64x128xf32>
    %c0_4 = arith.constant 0 : index
    %c0_5 = arith.constant 0 : index
    %4 = vector.load %arg4[%c0_4, %c0_5] : memref<1x128xf32, #tpu.memory_space<vmem>>, vector<1x128xf32>
    %5 = vector.broadcast %4 : vector<1x128xf32> to vector<64x128xf32>
    %6 = arith.addf %3, %5 : vector<64x128xf32>
    %c0_6 = arith.constant 0 : index
    %c0_7 = arith.constant 0 : index
    %c0_8 = arith.constant 0 : index
    %7 = vector.load %arg5[%c0_6, %c0_7, %c0_8] : memref<1x64x128xf32, #tpu.memory_space<vmem>>, vector<1x64x128xf32>
    %8 = vector.shape_cast %7 : vector<1x64x128xf32> to vector<64x128xf32>
    %9 = vector.shape_cast %6 : vector<64x128xf32> to vector<1x64x128xf32>
    tpu.vector_store %arg5[%c0_6, %c0_7, %c0_8], %9 {strides = array<i32>} : memref<1x64x128xf32, #tpu.memory_space<vmem>>, vector<1x64x128xf32>,
    return
  }
  func.func @transform_0(%arg0: i32, %arg1: i32) -> (i32, i32, i32) {
    %c0_i32 = arith.constant 0 : i32
    %c0_i32_0 = arith.constant 0 : i32
    return %arg0, %arg1, %c0_i32 : i32, i32, i32
  }
  func.func @transform_1(%arg0: i32, %arg1: i32) -> (i32, i32) {
    %c0_i32 = arith.constant 0 : i32
    %c0_i32_0 = arith.constant 0 : i32
    %c0_i32_1 = arith.constant 0 : i32
    return %c0_i32, %c0_i32_0 : i32, i32
  }
  func.func @transform_2(%arg0: i32, %arg1: i32) -> (i32, i32) {
    %c0_i32 = arith.constant 0 : i32
    %c0_i32_0 = arith.constant 0 : i32
    %c0_i32_1 = arith.constant 0 : i32
    return %c0_i32, %c0_i32_0 : i32, i32
  }
  func.func @transform_3(%arg0: i32, %arg1: i32) -> (i32, i32, i32) {
    %c0_i32 = arith.constant 0 : i32
    %c0_i32_0 = arith.constant 0 : i32
    return %arg0, %arg1, %c0_i32 : i32, i32, i32
  }
}

</mosaic_0001>

<llo_original>
// kernel: _conv_downsample.1
$region0: #{_conv_downsample.1}
  #allocation0 [shape = 'u32[]', space=smem, size = 0x4, offset = 0x4, fixed_abs, tag = 'smem constant byte address 0x4 - core index']
  #allocation1 [shape = 'u32[144,128]{1,0:T(1,128)}', space=vmem, size = 0x12000, scoped, tag = 'internal scratch']
  %s0 = inlined_call_operand.vmem [shape: bf16[2,64,128], index: 0, kind: input, shape index: {}]
  %s1 = inlined_call_operand.vmem [shape: bf16[128,128], index: 1, kind: input, shape index: {}]
  %s2 = inlined_call_operand.vmem [shape: f32[1,128], index: 2, kind: input, shape index: {}]
  %s3 = inlined_call_operand.vmem [shape: f32[2,64,128], index: 3, kind: output, shape index: {}]
  %s4 = sld [smem:[#allocation0]]
  $region45: #{_conv_downsample.1} parent=0
    _
  %s6 = ssub.s32 1, %s4
  %s7 = scalar_select 0, %s6, %s4
  loop: start=0, step=1, limit=4
  $region2: #{_conv_downsample.1} parent=0 // loop_pre_header
    _
  $region3: #{_conv_downsample.1} parent=0 // loop_header
    %s9 = sphi 0, %s13
    %p10 = scmp.ge.s32.totalorder %s9, 4
    %s16 = sphi 0, %s28
    %s17 = sphi 0, %s24
    %s18 = sphi 0, %s16
    %s19 = sphi 0, %s17
    %s20 = sphi 0, %s18
    %s21 = sphi 0, %s19
    %s33 = sphi 0, %s35
    %s36 = sphi 0, %s33
    %s37 = sphi 0, %s36
    %s53 = sphi 0, %s37
    %s57 = sphi 0, %s57
    %s59 = sphi 0, %s57
    %s60 = sphi 0, %s59
    %s74 = sphi 0, %s60
    %s78 = sphi 0, %s78
    %s80 = sphi 0, %s78
    %s81 = sphi 0, %s80
    %s95 = sphi 0, %s81
    %s103 = sphi 0, %s105
    %s106 = sphi 0, %s103
    %s107 = sphi 0, %s106
    %s123 = sphi 0, %s107
  $region4: #{_conv_downsample.1} parent=0 // loop_header_branch
    %12 = sbr.rel (%p10) target = $region8
  $region5: #{_conv_downsample.1} parent=0 // loop_body
    %s14 = ssub.s32 %s9, 1
    %s15 = ssub.s32 %s9, 2
    %s22 = sadd.s32 1, %s17
    %p23 = scmp.ge.s32.totalorder %s22, 1
    %s24 = scalar_select %p23, 0, %s22
    %s25 = sadd.s32 1, %s16
    %s26 = scalar_select %p23, %s25, %s16
    %p27 = scmp.ge.s32.totalorder %s26, 2
    %s28 = scalar_select %p27, 0, %s26
    %s29 = ssub.s32 %s16, %s28
    %s30 = ssub.s32 %s17, %s24
    %s31 = sor.u32 %s29, %s30
    %p32 = scmp.eq.s32.totalorder %s31, 0
    %s34 = sadd.s32 %s33, 1
    %s35 = scalar_select %p32, %s33, %s34
    %p38 = pneg %p32
    %p39 = scmp.eq.s32.totalorder %s9, 1
    %p40 = por %p38, %p39
    %p41 = scmp.ne.s32.totalorder %s33, %s36
    %p42 = scmp.eq.s32.totalorder %s9, 0
    %p43 = por %p41, %p42
    %p44 = scmp.ne.s32.totalorder %s33, %s36
    %p45 = scmp.eq.s32.totalorder %s14, 1
    %p46 = por %p44, %p45
    %p47 = scmp.ne.s32.totalorder %s36, %s37
    %p48 = scmp.eq.s32.totalorder %s14, 0
    %p49 = por %p47, %p48
    %p50 = scmp.ne.s32.totalorder %s36, %s37
    %p51 = scmp.eq.s32.totalorder %s15, 1
    %p52 = por %p50, %p51
    %p54 = scmp.ne.s32.totalorder %s37, %s53
    %p55 = scmp.eq.s32.totalorder %s15, 0
    %p56 = por %p54, %p55
    %s58 = sadd.s32 %s57, 1
    %p61 = scmp.eq.s32.totalorder %s9, 1
    %p62 = scmp.ne.s32.totalorder %s57, %s59
    %p63 = scmp.eq.s32.totalorder %s9, 0
    %p64 = por %p62, %p63
    %p65 = scmp.ne.s32.totalorder %s57, %s59
    %p66 = scmp.eq.s32.totalorder %s14, 1
    %p67 = por %p65, %p66
    %p68 = scmp.ne.s32.totalorder %s59, %s60
    %p69 = scmp.eq.s32.totalorder %s14, 0
    %p70 = por %p68, %p69
    %p71 = scmp.ne.s32.totalorder %s59, %s60
    %p72 = scmp.eq.s32.totalorder %s15, 1
    %p73 = por %p71, %p72
    %p75 = scmp.ne.s32.totalorder %s60, %s74
    %p76 = scmp.eq.s32.totalorder %s15, 0
    %p77 = por %p75, %p76
    %s79 = sadd.s32 %s78, 1
    %p82 = scmp.eq.s32.totalorder %s9, 1
    %p83 = scmp.ne.s32.totalorder %s78, %s80
    %p84 = scmp.eq.s32.totalorder %s9, 0
    %p85 = por %p83, %p84
    %p86 = scmp.ne.s32.totalorder %s78, %s80
    %p87 = scmp.eq.s32.totalorder %s14, 1
    %p88 = por %p86, %p87
    %p89 = scmp.ne.s32.totalorder %s80, %s81
    %p90 = scmp.eq.s32.totalorder %s14, 0
    %p91 = por %p89, %p90
    %p92 = scmp.ne.s32.totalorder %s80, %s81
    %p93 = scmp.eq.s32.totalorder %s15, 1
    %p94 = por %p92, %p93
    %p96 = scmp.ne.s32.totalorder %s81, %s95
    %p97 = scmp.eq.s32.totalorder %s15, 0
    %p98 = por %p96, %p97
    %s99 = ssub.s32 %s16, %s28
    %s100 = ssub.s32 %s17, %s24
    %s101 = sor.u32 %s99, %s100
    %p102 = scmp.eq.s32.totalorder %s101, 0
    %s104 = sadd.s32 %s103, 1
    %s105 = scalar_select %p102, %s103, %s104
    %p108 = pneg %p102
    %p109 = scmp.eq.s32.totalorder %s9, 1
    %p110 = por %p108, %p109
    %p111 = scmp.ne.s32.totalorder %s103, %s106
    %p112 = scmp.eq.s32.totalorder %s9, 0
    %p113 = por %p111, %p112
    %p114 = scmp.ne.s32.totalorder %s103, %s106
    %p115 = scmp.eq.s32.totalorder %s14, 1
    %p116 = por %p114, %p115
    %p117 = scmp.ne.s32.totalorder %s106, %s107
    %p118 = scmp.eq.s32.totalorder %s14, 0
    %p119 = por %p117, %p118
    %p120 = scmp.ne.s32.totalorder %s106, %s107
    %p121 = scmp.eq.s32.totalorder %s15, 1
    %p122 = por %p120, %p121
    %p124 = scmp.ne.s32.totalorder %s107, %s123
    %p125 = scmp.eq.s32.totalorder %s15, 0
    %p126 = por %p124, %p125
    %p127 = scmp.le.s32.totalorder 1, %s9
    %p128 = scmp.lt.s32.totalorder %s9, 3
    %p129 = pnand %p127, %p128
    %p130 = pneg %p129
    // Predicated region
    $region9: #{_conv_downsample.1} parent=5 // pred_check
      _
    $region10: #{_conv_downsample.1} parent=5 // pred_check_branch
      %132 = sbr.rel (%p129) target = $region12
    $region11: #{_conv_downsample.1} parent=5 // pred_region
      %s133 = ssub.s32 %s9, 1
      // Predicated region
      $region13: #{_conv_downsample.1} parent=11 // pred_check
        %p134 = pneg %p70
      $region14: #{_conv_downsample.1} parent=11 // pred_check_branch
        %136 = sbr.rel (%p134) target = $region16
      $region15: #{_conv_downsample.1} parent=11 // pred_region
        _
      $region16: #{_conv_downsample.1} parent=11 // pred_fallthru
        _
      // Predicated region
      $region17: #{_conv_downsample.1} parent=11 // pred_check
        %p137 = pneg %p91
      $region18: #{_conv_downsample.1} parent=11 // pred_check_branch
        %139 = sbr.rel (%p137) target = $region20
      $region19: #{_conv_downsample.1} parent=11 // pred_region
        _
      $region20: #{_conv_downsample.1} parent=11 // pred_fallthru
        _
    $region12: #{_conv_downsample.1} parent=5 // pred_fallthru
      _
    %p140 = scmp.lt.s32.totalorder %s9, 2
    // Predicated region
    $region21: #{_conv_downsample.1} parent=5 // pred_check
      %p141 = pneg %p140
    $region22: #{_conv_downsample.1} parent=5 // pred_check_branch
      %143 = sbr.rel (%p141) target = $region24
    $region23: #{_conv_downsample.1} parent=5 // pred_region
      // Predicated region
      $region25: #{_conv_downsample.1} parent=23 // pred_check
        %p144 = pneg %p43
      $region26: #{_conv_downsample.1} parent=23 // pred_check_branch
        %146 = sbr.rel (%p144) target = $region28
      $region27: #{_conv_downsample.1} parent=23 // pred_region
        %s147 = smul.u32 8, %s17
        %p148 = scmp.lt.s32.totalorder %s16, 1
        %s149 = scalar_select %p148, %s16, 1
        %p150 = scmp.lt.s32.totalorder %s147, 7
        %s151 = scalar_select %p150, %s147, 7
        %s152 = smul.addr %s149, 8
        %s153 = sadd.s32 %s151, %s152
        %s154 = smul.addr %s153, 4
        %s155 = scalar_lea.vmem %s0, %s154
        %s156 = smul.u32 8, %s17
      $region28: #{_conv_downsample.1} parent=23 // pred_fallthru
        _
    $region24: #{_conv_downsample.1} parent=5 // pred_fallthru
      _
    %p157 = scmp.le.s32.totalorder 1, %s9
    %p158 = scmp.lt.s32.totalorder %s9, 3
    %p159 = pnand %p157, %p158
    %p160 = pneg %p159
    // Predicated region
    $region29: #{_conv_downsample.1} parent=5 // pred_check
      _
    $region30: #{_conv_downsample.1} parent=5 // pred_check_branch
      %162 = sbr.rel (%p159) target = $region32
    $region31: #{_conv_downsample.1} parent=5 // pred_region
      %s163 = ssub.s32 %s9, 1
      %s164 = smul.u32 8, %s19
      %p165 = scmp.lt.s32.totalorder %s18, 1
      %s166 = scalar_select %p165, %s18, 1
      %p167 = scmp.lt.s32.totalorder %s164, 7
      %s168 = scalar_select %p167, %s164, 7
      %s169 = smul.addr %s166, 8
      %s170 = sadd.s32 %s168, %s169
      %s171 = smul.addr %s170, 4
      %s172 = scalar_lea.vmem %s0, %s171
      %p173 = pneg %p49
      %p174 = pneg %p46
      %p175 = pneg %p70
      %p176 = pneg %p67
      %p177 = pneg %p91
      %p178 = pneg %p88
      %p179 = pneg %p119
      %p180 = pneg %p116
      %s181 = smul.u32 8, %s19
      %p182 = scmp.lt.s32.totalorder %s18, 1
      %s183 = scalar_select %p182, %s18, 1
      %p184 = scmp.lt.s32.totalorder %s181, 7
      %s185 = scalar_select %p184, %s181, 7
      %s186 = smul.addr %s183, 8
      %s187 = sadd.s32 %s185, %s186
      %s188 = smul.addr %s187, 8
      %s189 = scalar_lea.vmem %s3, %s188
      %s190 = smul.u32 8, %s19
      %p191 = scmp.lt.s32.totalorder %s18, 1
      %s192 = scalar_select %p191, %s18, 1
      %p193 = scmp.lt.s32.totalorder %s190, 7
      %s194 = scalar_select %p193, %s190, 7
      %s195 = smul.addr %s192, 8
      %s196 = sadd.s32 %s194, %s195
      %s197 = smul.addr %s196, 4
      %s198 = scalar_lea.vmem %s0, %s197
      %s199 = smul.u32 8, %s19
      %s200 = smul.u32 8, %s19
      %p201 = scmp.lt.s32.totalorder %s18, 1
      %s202 = scalar_select %p201, %s18, 1
      %p203 = scmp.lt.s32.totalorder %s200, 7
      %s204 = scalar_select %p203, %s200, 7
      %s205 = smul.addr %s202, 8
      %s206 = sadd.s32 %s204, %s205
      %s207 = smul.addr %s206, 8
      %s208 = scalar_lea.vmem %s3, %s207
      %s209 = smul.u32 8, %s19
      %v211 = vld [vmem:[%s198] sm:$0xf]
      %v212 = vld [vmem:[%s198 + $0x4] sm:$0xf]
      %v213 = vld [vmem:[%s198 + $0x8] sm:$0xf]
      %v214 = vld [vmem:[%s198 + $0xc] sm:$0xf]
      %v215 = vld [vmem:[%s198 + $0x10] sm:$0xf]
      %v216 = vld [vmem:[%s198 + $0x14] sm:$0xf]
      %v217 = vld [vmem:[%s198 + $0x18] sm:$0xf]
      %v218 = vld [vmem:[%s198 + $0x1c] sm:$0xf]
      %v219 = vld [vmem:[%s1] sm:$0xf]
      %v220 = vld [vmem:[%s1 + $0x4] sm:$0xf]
      %v221 = vld [vmem:[%s1 + $0x8] sm:$0xf]
      %v222 = vld [vmem:[%s1 + $0xc] sm:$0xf]
      %v223 = vld [vmem:[%s1 + $0x10] sm:$0xf]
      %v224 = vld [vmem:[%s1 + $0x14] sm:$0xf]
      %v225 = vld [vmem:[%s1 + $0x18] sm:$0xf]
      %v226 = vld [vmem:[%s1 + $0x1c] sm:$0xf]
      %v227 = vld [vmem:[%s1 + $0x20] sm:$0xf]
      %v228 = vld [vmem:[%s1 + $0x24] sm:$0xf]
      %v229 = vld [vmem:[%s1 + $0x28] sm:$0xf]
      %v230 = vld [vmem:[%s1 + $0x2c] sm:$0xf]
      %v231 = vld [vmem:[%s1 + $0x30] sm:$0xf]
      %v232 = vld [vmem:[%s1 + $0x34] sm:$0xf]
      %v233 = vld [vmem:[%s1 + $0x38] sm:$0xf]
      %v234 = vld [vmem:[%s1 + $0x3c] sm:$0xf]
      %v235 = vld [vmem:[%s2] sm:$0x1]
      %v237 = vlaneseq
      %v238 = vshrl.u32 %v237, 7
      %v239 = vsub.s32 0, %v238
      %v240 = vrot.slane %v235, %v239
      %v250 = vunpack.c.l.b16 %v211
      %v251 = vunpack.c.l.b16 %v212
      %v252 = vunpack.c.l.b16 %v213
      %v253 = vunpack.c.l.b16 %v214
      %v254 = vunpack.c.l.b16 %v215
      %v255 = vunpack.c.l.b16 %v216
      %v256 = vunpack.c.l.b16 %v217
      %v257 = vunpack.c.l.b16 %v218
      %v258 = vpack.c.b16 %v251, %v250
      %v259 = vpack.c.b16 %v253, %v252
      %v260 = vpack.c.b16 %v255, %v254
      %v261 = vpack.c.b16 %v257, %v256
      %v282 = vunpack.c.l.b16 %v219
      %v283 = vunpack.c.l.b16 %v220
      %v284 = vunpack.c.l.b16 %v221
      %v285 = vunpack.c.l.b16 %v222
      %v286 = vunpack.c.l.b16 %v223
      %v287 = vunpack.c.l.b16 %v224
      %v288 = vunpack.c.l.b16 %v225
      %v289 = vunpack.c.l.b16 %v226
      %v290 = vunpack.c.l.b16 %v227
      %v291 = vunpack.c.l.b16 %v228
      %v292 = vunpack.c.l.b16 %v229
      %v293 = vunpack.c.l.b16 %v230
      %v294 = vunpack.c.l.b16 %v231
      %v295 = vunpack.c.l.b16 %v232
      %v296 = vunpack.c.l.b16 %v233
      %v297 = vunpack.c.l.b16 %v234
      %v298 = vpack.c.b16 %v283, %v282
      %v299 = vpack.c.b16 %v285, %v284
      %v300 = vpack.c.b16 %v287, %v286
      %v301 = vpack.c.b16 %v289, %v288
      %v302 = vpack.c.b16 %v291, %v290
      %v303 = vpack.c.b16 %v293, %v292
      %v304 = vpack.c.b16 %v295, %v294
      %v305 = vpack.c.b16 %v297, %v296
      %314 = vmatprep.subr.bf16.mxu0 0
      %315 = vmatpush1.bf16.msra.mxu0 %v298
      %316 = vmatprep.subr.bf16.mxu0 0
      %317 = vmatpush1.bf16.msra.mxu0 %v299
      %318 = vmatprep.subr.bf16.mxu0 0
      %319 = vmatpush1.bf16.msra.mxu0 %v300
      %320 = vmatprep.subr.bf16.mxu0 0
      %321 = vmatpush1.bf16.msra.mxu0 %v301
      %322 = vmatprep.subr.bf16.mxu0 0
      %323 = vmatpush1.bf16.msra.mxu0 %v302
      %324 = vmatprep.subr.bf16.mxu0 0
      %325 = vmatpush1.bf16.msra.mxu0 %v303
      %326 = vmatprep.subr.bf16.mxu0 0
      %327 = vmatpush1.bf16.msra.mxu0 %v304
      %328 = vmatprep.subr.bf16.mxu0 0
      %329 = vmatpush1.bf16.msra.mxu0 %v305
      %330 = vmatprep.subr.bf16.mxu0 0
      %331 = vmatpush1.bf16.msra.mxu0 0
      %332 = vmatprep.subr.bf16.mxu0 0
      %333 = vmatpush1.bf16.msra.mxu0 0
      %334 = vmatprep.subr.bf16.mxu0 0
      %335 = vmatpush1.bf16.msra.mxu0 0
      %336 = vmatprep.subr.bf16.mxu0 0
      %337 = vmatpush1.bf16.msra.mxu0 0
      %338 = vmatprep.subr.bf16.mxu0 0
      %339 = vmatpush1.bf16.msra.mxu0 0
      %340 = vmatprep.subr.bf16.mxu0 0
      %341 = vmatpush1.bf16.msra.mxu0 0
      %342 = vmatprep.subr.bf16.mxu0 0
      %343 = vmatpush1.bf16.msra.mxu0 0
      %344 = vmatprep.subr.bf16.mxu0 0
      %345 = vmatpush1.bf16.msra.mxu0 0
      %346 = vmatprep.mubr.bf16.mxu0 0
      %347 = vmatmul.mubr.bf16.gmra.mrb[0].mxu0 %v258
      %v348 = vpop.f32.mrb[0].mxu0
      %v349 = vadd.f32 %v240, %v348
      %v350 = vpop.f32.mrb[0].mxu0
      %v351 = vpop.f32.mrb[0].mxu0
      %v352 = vadd.f32 %v240, %v351
      %v353 = vpop.f32.mrb[0].mxu0
      %354 = vmatprep.mubr.bf16.mxu0 0
      %355 = vmatmul.mubr.bf16.gmra.mrb[0].mxu0 %v259
      %v356 = vpop.f32.mrb[0].mxu0
      %v357 = vadd.f32 %v240, %v356
      %v358 = vpop.f32.mrb[0].mxu0
      %v359 = vpop.f32.mrb[0].mxu0
      %v360 = vadd.f32 %v240, %v359
      %v361 = vpop.f32.mrb[0].mxu0
      %362 = vmatprep.mubr.bf16.mxu0 0
      %363 = vmatmul.mubr.bf16.gmra.mrb[0].mxu0 %v260
      %v364 = vpop.f32.mrb[0].mxu0
      %v365 = vadd.f32 %v240, %v364
      %v366 = vpop.f32.mrb[0].mxu0
      %v367 = vpop.f32.mrb[0].mxu0
      %v368 = vadd.f32 %v240, %v367
      %v369 = vpop.f32.mrb[0].mxu0
      %370 = vmatprep.mubr.bf16.mxu0 0
      %371 = vmatmul.mubr.bf16.gmra.mrb[0].mxu0 %v261
      %v372 = vpop.f32.mrb[0].mxu0
      %v373 = vadd.f32 %v240, %v372
      %v374 = vpop.f32.mrb[0].mxu0
      %v375 = vpop.f32.mrb[0].mxu0
      %v376 = vadd.f32 %v240, %v375
      %v377 = vpop.f32.mrb[0].mxu0
      %378 = vdwg.mxu0
      %379 = vst [vmem:[%s208] sm:$0xff] %v349
      %380 = vst [vmem:[%s208 + $0x8] sm:$0xff] %v352
      %381 = vst [vmem:[%s208 + $0x10] sm:$0xff] %v357
      %382 = vst [vmem:[%s208 + $0x18] sm:$0xff] %v360
      %383 = vst [vmem:[%s208 + $0x20] sm:$0xff] %v365
      %384 = vst [vmem:[%s208 + $0x28] sm:$0xff] %v368
      %385 = vst [vmem:[%s208 + $0x30] sm:$0xff] %v373
      %386 = vst [vmem:[%s208 + $0x38] sm:$0xff] %v376
      %s387 = smul.u32 8, %s19
      %p388 = scmp.lt.s32.totalorder %s18, 1
      %s389 = scalar_select %p388, %s18, 1
      %p390 = scmp.lt.s32.totalorder %s387, 7
      %s391 = scalar_select %p390, %s387, 7
      %s392 = smul.addr %s389, 8
      %s393 = sadd.s32 %s391, %s392
      %s394 = smul.addr %s393, 8
      %s395 = scalar_lea.vmem %s3, %s394
      // Predicated region
      $region33: #{_conv_downsample.1} parent=31 // pred_check
        %p396 = pneg %p116
      $region34: #{_conv_downsample.1} parent=31 // pred_check_branch
        %398 = sbr.rel (%p396) target = $region36
      $region35: #{_conv_downsample.1} parent=31 // pred_region
        %s399 = smul.u32 8, %s19
      $region36: #{_conv_downsample.1} parent=31 // pred_fallthru
        _
    $region32: #{_conv_downsample.1} parent=5 // pred_fallthru
      _
    %p400 = scmp.le.s32.totalorder 2, %s9
    // Predicated region
    $region37: #{_conv_downsample.1} parent=5 // pred_check
      %p401 = pneg %p400
    $region38: #{_conv_downsample.1} parent=5 // pred_check_branch
      %403 = sbr.rel (%p401) target = $region40
    $region39: #{_conv_downsample.1} parent=5 // pred_region
      %s404 = ssub.s32 %s9, 2
      // Predicated region
      $region41: #{_conv_downsample.1} parent=39 // pred_check
        %p405 = pneg %p122
      $region42: #{_conv_downsample.1} parent=39 // pred_check_branch
        %407 = sbr.rel (%p405) target = $region44
      $region43: #{_conv_downsample.1} parent=39 // pred_region
        %s408 = smul.u32 8, %s21
        %p409 = scmp.lt.s32.totalorder %s20, 1
        %s410 = scalar_select %p409, %s20, 1
        %p411 = scmp.lt.s32.totalorder %s408, 7
        %s412 = scalar_select %p411, %s408, 7
        %s413 = smul.addr %s410, 8
        %s414 = sadd.s32 %s412, %s413
        %s415 = smul.addr %s414, 8
        %s416 = scalar_lea.vmem %s3, %s415
      $region44: #{_conv_downsample.1} parent=39 // pred_fallthru
        _
    $region40: #{_conv_downsample.1} parent=5 // pred_fallthru
      _
  $region6: #{_conv_downsample.1} parent=0 // loop_footer
    %s13 = sadd.s32 1, %s9
  $region7: #{_conv_downsample.1} parent=0 // loop_footer_branch
    %8 = sbr.rel target = $region3
  $region8: #{_conv_downsample.1} parent=0 // loop_exit
    _

</llo_original>
